<compile_context>
chip_gen: v5e
topology: v5e:2x2
jax: 0.10.0
libtpu: 0.0.40
codegen_flags: <defaults>
</compile_context>

<pallas_src>
import math

import jax
import jax.numpy as jnp
from jax.experimental import pallas as pl
from jax.experimental.pallas import tpu as pltpu

PLAN = [32, 32]               # hidden layer widths (global read by the module)
USER_INPUT_LOGVAR = -20.0
LN_EPS = 1e-5                 # nn.LayerNorm default


def _round_up(x, m):
    return (x + m - 1) // m * m


# --------------------------------------------------------------------------
# Kernel (feature-major: h is (features, batch_tile))
# --------------------------------------------------------------------------
def _make_kernel(layout, ln_eps, matmul_dtype):
    """layout: static tuple per fused layer of
       (w_row_offset, dout, k_in, bias_col, gamma_col, beta_col, has_ln)."""

    def kernel(x_ref, w_ref, v_ref, out_ref):
        h = x_ref[...]                                     # (WMAX, bt) fp32
        for (off, dout, k, b_col, g_col, be_col, has_ln) in layout:
            # Pre-sampled weights, natural (out, in) orientation -> matmul LHS.
            w = w_ref[off:off + dout, 0:k]                 # (dout, k)
            h = jnp.dot(w.astype(matmul_dtype), h.astype(matmul_dtype),
                        preferred_element_type=jnp.float32)
            h = h + v_ref[0:dout, b_col:b_col + 1]         # bias: lane broadcast

            if has_ln:
                # LayerNorm over the feature (sublane) axis, single-pass stats.
                mu = jnp.mean(h, axis=0, keepdims=True)
                ms = jnp.mean(h * h, axis=0, keepdims=True)
                var = jnp.maximum(ms - mu * mu, 0.0)
                h = (h - mu) * jax.lax.rsqrt(var + ln_eps)
                h = (h * v_ref[0:dout, g_col:g_col + 1]
                     + v_ref[0:dout, be_col:be_col + 1])
                h = jnp.maximum(h, 0.0)                    # ReLU

        # Fused head output [ mean_z ; logvar_z ]: lane-dense (2*z_dim, bt) store.
        out_ref[...] = h

    return kernel


# --------------------------------------------------------------------------
# Batch-tile selection (large tiles; keep >=2 programs for v7x megacore)
# --------------------------------------------------------------------------
def _choose_batch_tile(B, batch_tile):
    if B <= 256:
        return B                                   # single full-array block
    bt = min(batch_tile, B)
    # keep >= 2 programs so the "parallel" batch axis can split across v7x TCs
    bt = min(bt, _round_up(pl.cdiv(B, 2), 128))
    bt = max(128, bt // 128 * 128)                 # lane axis: multiple of 128
    return bt


# --------------------------------------------------------------------------
# Wrapper
# --------------------------------------------------------------------------
def stochastic_recognition_forward(x, w_slab, v_slab, layout, z_dim, *,
                                   batch_tile=4096, matmul_dtype=jnp.float32):
    B, D = x.shape
    WMAX = w_slab.shape[1]
    out_rows = 2 * z_dim

    # Feature-major input: features on sublanes, batch on lanes; zero-pad the
    # feature dim to the slab width so every in-kernel weight slice is full width.
    xt = jnp.zeros((WMAX, B), jnp.float32).at[:D, :].set(x.T.astype(jnp.float32))

    bt = _choose_batch_tile(B, batch_tile)
    grid = (pl.cdiv(B, bt),)

    flops = 2 * B * sum(dout * k for (_, dout, k, *_r) in layout)
    bytes_accessed = 4 * (xt.size + w_slab.size + v_slab.size + out_rows * B)

    out = pl.pallas_call(
        _make_kernel(layout, LN_EPS, matmul_dtype),
        out_shape=jax.ShapeDtypeStruct((out_rows, B), jnp.float32),
        grid=grid,
        in_specs=[
            pl.BlockSpec((WMAX, bt), lambda i: (0, i)),      # x.T: tiled on lanes
            pl.BlockSpec(w_slab.shape, lambda i: (0, 0)),    # sampled weight slab
            pl.BlockSpec(v_slab.shape, lambda i: (0, 0)),    # bias/LN column slab
        ],
        out_specs=pl.BlockSpec((out_rows, bt), lambda i: (0, i)),
        compiler_params=pltpu.CompilerParams(
            # Batch axis is embarrassingly parallel -> megacore split on v7x.
            dimension_semantics=("parallel",),
        ),
        cost_estimate=pl.CostEstimate(flops=int(flops), transcendentals=0,
                                      bytes_accessed=int(bytes_accessed)),
    )(xt, w_slab, v_slab)

    return out[:z_dim, :].T, out[z_dim:, :].T


# --------------------------------------------------------------------------
# Parameter construction (mirrors __init__ + randn_like at forward time)
# --------------------------------------------------------------------------
def build_params(key, input_dim, z_dim):
    dims_in = [input_dim] + PLAN[:-1] + [PLAN[-1], PLAN[-1]]
    dims_out = PLAN + [z_dim, z_dim]
    keys = jax.random.split(key, 3 * len(dims_in))
    params = []
    ki = 0
    for li, (din, dout) in enumerate(zip(dims_in, dims_out)):
        std = math.sqrt(2.0 / din)        # kaiming_normal_, fan_in, relu
        p = dict(
            w_mean=std * jax.random.normal(keys[ki], (dout, din), jnp.float32),
            w_logvar=jnp.full((dout, din), USER_INPUT_LOGVAR, jnp.float32),
            eps_w=jax.random.normal(keys[ki + 1], (dout, din), jnp.float32),
            b_mean=jnp.zeros((dout,), jnp.float32),
            b_logvar=jnp.full((dout,), USER_INPUT_LOGVAR, jnp.float32),
            eps_b=jax.random.normal(keys[ki + 2], (dout,), jnp.float32),
        )
        ki += 3
        if li < len(PLAN):                # hidden layers carry a LayerNorm
            p["gamma"] = jnp.ones((dout,), jnp.float32)
            p["beta"] = jnp.zeros((dout,), jnp.float32)
        params.append(p)
    return params


def pack_params(params, z_dim):
    """Sample the reparameterized weights/biases ONCE (plain JAX, outside the
    grid loop) and pack them into two small fp32 slabs + a static layout."""
    H = len(PLAN)

    def sample(mean, logvar, eps):
        return mean + eps * jnp.exp(0.5 * logvar)

    sampled = []
    for p in params:
        sampled.append(dict(
            w=sample(p["w_mean"], p["w_logvar"], p["eps_w"]),
            b=sample(p["b_mean"], p["b_logvar"], p["eps_b"]),
            gamma=p.get("gamma"), beta=p.get("beta")))

    fused = [(s["w"], s["b"], s["gamma"], s["beta"]) for s in sampled[:H]]
    h1, h2 = sampled[H], sampled[H + 1]
    fused.append((jnp.concatenate([h1["w"], h2["w"]], axis=0),   # [mean_z ; logvar_z]
                  jnp.concatenate([h1["b"], h2["b"]]),
                  None, None))

    L = len(fused)
    WMAX = max(_round_up(w.shape[1], 8) for (w, _, _, _) in fused)
    max_out = max(_round_up(w.shape[0], 8) for (w, _, _, _) in fused)

    blocks, layout, row = [], [], 0
    n_cols = L + 2 * H                       # bias columns + gamma + beta columns
    vcols = jnp.zeros((max_out, n_cols), jnp.float32)
    for li, (w, b, g, be) in enumerate(fused):
        dout, din = w.shape
        pout = _round_up(dout, 8)
        blocks.append(jnp.zeros((pout, WMAX), jnp.float32).at[:dout, :din].set(w))
        vcols = vcols.at[:dout, li].set(b)
        if g is not None:
            g_col, be_col = L + li, L + H + li
            vcols = vcols.at[:dout, g_col].set(g)
            vcols = vcols.at[:dout, be_col].set(be)
        else:
            g_col = be_col = -1
        # Contraction width seen in-kernel: layer 0 consumes the zero-padded
        # (WMAX, bt) input; later layers consume the previous layer's dout rows.
        k = WMAX if li == 0 else fused[li - 1][0].shape[0]
        assert li == 0 or k == din, "layer input dim must match previous output dim"
        layout.append((row, dout, k, li, g_col, be_col, g is not None))
        row += pout

    w_slab = jnp.concatenate(blocks, axis=0)
    return w_slab, vcols, tuple(layout), WMAX


# --------------------------------------------------------------------------
# Pure-JAX reference reproducing the PyTorch forward semantics
# --------------------------------------------------------------------------
def reference_forward(x, params):
    def sample(m, lv, e):
        return m + e * jnp.exp(0.5 * lv)

    h = x
    for p in params[:len(PLAN)]:
        w = sample(p["w_mean"], p["w_logvar"], p["eps_w"])
        b = sample(p["b_mean"], p["b_logvar"], p["eps_b"])
        h = h @ w.T + b[None, :]
        mu = jnp.mean(h, axis=-1, keepdims=True)
        var = jnp.mean((h - mu) ** 2, axis=-1, keepdims=True)
        h = (h - mu) / jnp.sqrt(var + LN_EPS) * p["gamma"] + p["beta"]
        h = jax.nn.relu(h)
    outs = []
    for p in params[len(PLAN):]:
        w = sample(p["w_mean"], p["w_logvar"], p["eps_w"])
        b = sample(p["b_mean"], p["b_logvar"], p["eps_b"])
        outs.append(h @ w.T + b[None, :])
    return tuple(outs)


# --------------------------------------------------------------------------
if __name__ == "__main__":
    INPUT_DIM, Z_DIM = 16, 8

    key = jax.random.PRNGKey(0)
    k_x, k_p, k_x2 = jax.random.split(key, 3)

    params = build_params(k_p, INPUT_DIM, Z_DIM)
    w_slab, v_slab, layout, WMAX = pack_params(params, Z_DIM)

    # Case 1: small batch -> single full-array block.
    B = 64
    x = jax.random.normal(k_x, (B, INPUT_DIM), jnp.float32)
    mean_z, logvar_z = stochastic_recognition_forward(x, w_slab, v_slab, layout, Z_DIM)
    jax.block_until_ready((mean_z, logvar_z))
    ref_mean, ref_logvar = reference_forward(x, params)
    assert mean_z.shape == (B, Z_DIM) and logvar_z.shape == (B, Z_DIM)
    assert jnp.allclose(mean_z, ref_mean, atol=2e-3, rtol=2e-3)
    assert jnp.allclose(logvar_z, ref_logvar, atol=2e-3, rtol=2e-3)

    # Case 2: larger batch -> multi-program grid (128-aligned lane tiles,
    # >=2 programs for megacore, partial last tile).
    B2 = 300
    x2 = jax.random.normal(k_x2, (B2, INPUT_DIM), jnp.float32)
    mean_z2, logvar_z2 = stochastic_recognition_forward(x2, w_slab, v_slab, layout, Z_DIM)
    jax.block_until_ready((mean_z2, logvar_z2))
    ref_mean2, ref_logvar2 = reference_forward(x2, params)
    assert jnp.allclose(mean_z2, ref_mean2, atol=2e-3, rtol=2e-3)
    assert jnp.allclose(logvar_z2, ref_logvar2, atol=2e-3, rtol=2e-3)

    print("KERNEL_OK")
</pallas_src>

<mosaic_0001>
module attributes {stable_mosaic.version = 11 : i64} {
  func.func @kernel(%arg0: i32, %arg1: memref<32x64xf32, #tpu.memory_space<vmem>>, %arg2: memref<80x32xf32, #tpu.memory_space<vmem>>, %arg3: memref<32x7xf32, #tpu.memory_space<vmem>>, %arg4: memref<16x64xf32, #tpu.memory_space<vmem>>) attributes {dimension_semantics = [#tpu.dimension_semantics<parallel>], iteration_bounds = array<i64: 1>, scalar_prefetch = 0 : i64, scratch_operands = 0 : i64, tpu.core_type = #tpu.core_type<tc>, window_params = [{transform_indices = @transform_0, window_bounds = array<i64: 32, 64>}, {pipeline_mode = #tpu.pipeline_mode<synchronous>, transform_indices = @transform_1, window_bounds = array<i64: 80, 32>}, {pipeline_mode = #tpu.pipeline_mode<synchronous>, transform_indices = @transform_2, window_bounds = array<i64: 32, 7>}, {transform_indices = @transform_3, window_bounds = array<i64: 16, 64>}]} {
    %c0 = arith.constant 0 : index
    %c0_0 = arith.constant 0 : index
    %0 = vector.load %arg1[%c0, %c0_0] : memref<32x64xf32, #tpu.memory_space<vmem>>, vector<32x64xf32>
    %c0_1 = arith.constant 0 : index
    %c0_2 = arith.constant 0 : index
    %1 = vector.load %arg2[%c0_1, %c0_2] : memref<80x32xf32, #tpu.memory_space<vmem>>, vector<32x32xf32>
    %cst = arith.constant dense<0.000000e+00> : vector<32x64xf32>
    %2 = tpu.matmul %1, %0, %cst {dimension_numbers = #tpu.dot_dimension_numbers<[1], [0], [0], [1], [0, 0, 1, 1], [], []>} : vector<32x32xf32>, vector<32x64xf32>, vector<32x64xf32> -> vector<32x64xf32>
    %c0_3 = arith.constant 0 : index
    %c0_4 = arith.constant 0 : index
    %3 = vector.load %arg3[%c0_3, %c0_4] : memref<32x7xf32, #tpu.memory_space<vmem>>, vector<32x1xf32>
    %4 = vector.broadcast %3 : vector<32x1xf32> to vector<32x64xf32>
    %5 = arith.addf %2, %4 : vector<32x64xf32>
    %cst_5 = arith.constant dense<0.000000e+00> : vector<64xf32>
    %6 = vector.multi_reduction <add>, %5, %cst_5 [0] : vector<32x64xf32> to vector<64xf32>
    %7 = vector.shape_cast %6 : vector<64xf32> to vector<1x64xf32>
    %cst_6 = arith.constant 3.200000e+01 : f32
    %8 = vector.broadcast %cst_6 : f32 to vector<1x64xf32>
    %9 = arith.divf %7, %8 : vector<1x64xf32>
    %10 = arith.mulf %5, %5 : vector<32x64xf32>
    %cst_7 = arith.constant dense<0.000000e+00> : vector<64xf32>
    %11 = vector.multi_reduction <add>, %10, %cst_7 [0] : vector<32x64xf32> to vector<64xf32>
    %12 = vector.shape_cast %11 : vector<64xf32> to vector<1x64xf32>
    %cst_8 = arith.constant 3.200000e+01 : f32
    %13 = vector.broadcast %cst_8 : f32 to vector<1x64xf32>
    %14 = arith.divf %12, %13 : vector<1x64xf32>
    %15 = arith.mulf %9, %9 : vector<1x64xf32>
    %16 = arith.subf %14, %15 : vector<1x64xf32>
    %cst_9 = arith.constant 0.000000e+00 : f32
    %17 = vector.broadcast %cst_9 : f32 to vector<1x64xf32>
    %18 = arith.maximumf %16, %17 : vector<1x64xf32>
    %19 = vector.broadcast %9 : vector<1x64xf32> to vector<32x64xf32>
    %20 = arith.subf %5, %19 : vector<32x64xf32>
    %cst_10 = arith.constant 9.99999974E-6 : f32
    %21 = vector.broadcast %cst_10 : f32 to vector<1x64xf32>
    %22 = arith.addf %18, %21 : vector<1x64xf32>
    %23 = math.rsqrt %22 : vector<1x64xf32>
    %24 = vector.broadcast %23 : vector<1x64xf32> to vector<32x64xf32>
    %25 = arith.mulf %20, %24 : vector<32x64xf32>
    %c0_11 = arith.constant 0 : index
    %c3 = arith.constant 3 : index
    %26 = vector.load %arg3[%c0_11, %c3] : memref<32x7xf32, #tpu.memory_space<vmem>>, vector<32x1xf32>
    %27 = vector.broadcast %26 : vector<32x1xf32> to vector<32x64xf32>
    %28 = arith.mulf %25, %27 : vector<32x64xf32>
    %c0_12 = arith.constant 0 : index
    %c5 = arith.constant 5 : index
    %29 = vector.load %arg3[%c0_12, %c5] : memref<32x7xf32, #tpu.memory_space<vmem>>, vector<32x1xf32>
    %30 = vector.broadcast %29 : vector<32x1xf32> to vector<32x64xf32>
    %31 = arith.addf %28, %30 : vector<32x64xf32>
    %cst_13 = arith.constant 0.000000e+00 : f32
    %32 = vector.broadcast %cst_13 : f32 to vector<32x64xf32>
    %33 = arith.maximumf %31, %32 : vector<32x64xf32>
    %c32 = arith.constant 32 : index
    %c0_14 = arith.constant 0 : index
    %34 = vector.load %arg2[%c32, %c0_14] : memref<80x32xf32, #tpu.memory_space<vmem>>, vector<32x32xf32>
    %cst_15 = arith.constant dense<0.000000e+00> : vector<32x64xf32>
    %35 = tpu.matmul %34, %33, %cst_15 {dimension_numbers = #tpu.dot_dimension_numbers<[1], [0], [0], [1], [0, 0, 1, 1], [], []>} : vector<32x32xf32>, vector<32x64xf32>, vector<32x64xf32> -> vector<32x64xf32>
    %c0_16 = arith.constant 0 : index
    %c1 = arith.constant 1 : index
    %36 = vector.load %arg3[%c0_16, %c1] : memref<32x7xf32, #tpu.memory_space<vmem>>, vector<32x1xf32>
    %37 = vector.broadcast %36 : vector<32x1xf32> to vector<32x64xf32>
    %38 = arith.addf %35, %37 : vector<32x64xf32>
    %cst_17 = arith.constant dense<0.000000e+00> : vector<64xf32>
    %39 = vector.multi_reduction <add>, %38, %cst_17 [0] : vector<32x64xf32> to vector<64xf32>
    %40 = vector.shape_cast %39 : vector<64xf32> to vector<1x64xf32>
    %cst_18 = arith.constant 3.200000e+01 : f32
    %41 = vector.broadcast %cst_18 : f32 to vector<1x64xf32>
    %42 = arith.divf %40, %41 : vector<1x64xf32>
    %43 = arith.mulf %38, %38 : vector<32x64xf32>
    %cst_19 = arith.constant dense<0.000000e+00> : vector<64xf32>
    %44 = vector.multi_reduction <add>, %43, %cst_19 [0] : vector<32x64xf32> to vector<64xf32>
    %45 = vector.shape_cast %44 : vector<64xf32> to vector<1x64xf32>
    %cst_20 = arith.constant 3.200000e+01 : f32
    %46 = vector.broadcast %cst_20 : f32 to vector<1x64xf32>
    %47 = arith.divf %45, %46 : vector<1x64xf32>
    %48 = arith.mulf %42, %42 : vector<1x64xf32>
    %49 = arith.subf %47, %48 : vector<1x64xf32>
    %cst_21 = arith.constant 0.000000e+00 : f32
    %50 = vector.broadcast %cst_21 : f32 to vector<1x64xf32>
    %51 = arith.maximumf %49, %50 : vector<1x64xf32>
    %52 = vector.broadcast %42 : vector<1x64xf32> to vector<32x64xf32>
    %53 = arith.subf %38, %52 : vector<32x64xf32>
    %cst_22 = arith.constant 9.99999974E-6 : f32
    %54 = vector.broadcast %cst_22 : f32 to vector<1x64xf32>
    %55 = arith.addf %51, %54 : vector<1x64xf32>
    %56 = math.rsqrt %55 : vector<1x64xf32>
    %57 = vector.broadcast %56 : vector<1x64xf32> to vector<32x64xf32>
    %58 = arith.mulf %53, %57 : vector<32x64xf32>
    %c0_23 = arith.constant 0 : index
    %c4 = arith.constant 4 : index
    %59 = vector.load %arg3[%c0_23, %c4] : memref<32x7xf32, #tpu.memory_space<vmem>>, vector<32x1xf32>
    %60 = vector.broadcast %59 : vector<32x1xf32> to vector<32x64xf32>
    %61 = arith.mulf %58, %60 : vector<32x64xf32>
    %c0_24 = arith.constant 0 : index
    %c6 = arith.constant 6 : index
    %62 = vector.load %arg3[%c0_24, %c6] : memref<32x7xf32, #tpu.memory_space<vmem>>, vector<32x1xf32>
    %63 = vector.broadcast %62 : vector<32x1xf32> to vector<32x64xf32>
    %64 = arith.addf %61, %63 : vector<32x64xf32>
    %cst_25 = arith.constant 0.000000e+00 : f32
    %65 = vector.broadcast %cst_25 : f32 to vector<32x64xf32>
    %66 = arith.maximumf %64, %65 : vector<32x64xf32>
    %c64 = arith.constant 64 : index
    %c0_26 = arith.constant 0 : index
    %67 = vector.load %arg2[%c64, %c0_26] : memref<80x32xf32, #tpu.memory_space<vmem>>, vector<16x32xf32>
    %cst_27 = arith.constant dense<0.000000e+00> : vector<16x64xf32>
    %68 = tpu.matmul %67, %66, %cst_27 {dimension_numbers = #tpu.dot_dimension_numbers<[1], [0], [0], [1], [0, 0, 1, 1], [], []>} : vector<16x32xf32>, vector<32x64xf32>, vector<16x64xf32> -> vector<16x64xf32>
    %c0_28 = arith.constant 0 : index
    %c2 = arith.constant 2 : index
    %69 = vector.load %arg3[%c0_28, %c2] : memref<32x7xf32, #tpu.memory_space<vmem>>, vector<16x1xf32>
    %70 = vector.broadcast %69 : vector<16x1xf32> to vector<16x64xf32>
    %71 = arith.addf %68, %70 : vector<16x64xf32>
    %c0_29 = arith.constant 0 : index
    %c0_30 = arith.constant 0 : index
    %72 = vector.load %arg4[%c0_29, %c0_30] : memref<16x64xf32, #tpu.memory_space<vmem>>, vector<16x64xf32>
    tpu.vector_store %arg4[%c0_29, %c0_30], %71 {strides = array<i32>} : memref<16x64xf32, #tpu.memory_space<vmem>>, vector<16x64xf32>,
    return
  }
  func.func @transform_0(%arg0: i32) -> (i32, i32) {
    %c0_i32 = arith.constant 0 : i32
    %c0_i32_0 = arith.constant 0 : i32
    return %c0_i32, %arg0 : i32, i32
  }
  func.func @transform_1(%arg0: i32) -> (i32, i32) {
    %c0_i32 = arith.constant 0 : i32
    %c0_i32_0 = arith.constant 0 : i32
    %c0_i32_1 = arith.constant 0 : i32
    return %c0_i32, %c0_i32_0 : i32, i32
  }
  func.func @transform_2(%arg0: i32) -> (i32, i32) {
    %c0_i32 = arith.constant 0 : i32
    %c0_i32_0 = arith.constant 0 : i32
    %c0_i32_1 = arith.constant 0 : i32
    return %c0_i32, %c0_i32_0 : i32, i32
  }
  func.func @transform_3(%arg0: i32) -> (i32, i32) {
    %c0_i32 = arith.constant 0 : i32
    %c0_i32_0 = arith.constant 0 : i32
    return %c0_i32, %arg0 : i32, i32
  }
}

</mosaic_0001>

<llo_original>
// kernel: tpu_custom_call.1
$region0: #{tpu_custom_call.1}
  #allocation0 [shape = 'u32[]', space=smem, size = 0x4, offset = 0x4, fixed_abs, tag = 'smem constant byte address 0x4 - core index']
  #allocation1 [shape = 'u32[72,128]{1,0:T(1,128)}', space=vmem, size = 0x9000, scoped, tag = 'internal scratch']
  %s0 = inlined_call_operand.vmem [shape: f32[32,64], index: 0, kind: input, shape index: {}]
  %s1 = inlined_call_operand.vmem [shape: f32[80,32], index: 1, kind: input, shape index: {}]
  %s2 = inlined_call_operand.vmem [shape: f32[32,7], index: 2, kind: input, shape index: {}]
  %s3 = inlined_call_operand.hbm [shape: f32[16,64], index: 3, kind: output, shape index: {}]
  %s4 = sld [smem:[#allocation0]]
  $region22: #{tpu_custom_call.1} parent=0
    _
  %s6 = ssub.s32 1, %s4
  %s7 = scalar_select 0, %s6, %s4
  $region1: #{tpu_custom_call.1} parent=0
    #allocation2 [shape = 'u8[8192]{0}', space=vmem, size = 0x2000, scoped, tag = 'output window, operand 0, single buffered']
    #allocation3 [shape = 's32[1]{0}', space=sflag, size = 0x4, scoped, tag = 'scoped memory for tpu_custom_call.1']
    %8 = vsyncpa [#allocation3], 0
    // Predicated region
    $region2: #{tpu_custom_call.1} parent=1 // pred_check
      _
    $region3: #{tpu_custom_call.1} parent=1 // pred_check_branch
      %10 = sbr.rel (0) target = $region5
    $region4: #{tpu_custom_call.1} parent=1 // pred_region
      _
    $region5: #{tpu_custom_call.1} parent=1 // pred_fallthru
      _
    // Predicated region
    $region6: #{tpu_custom_call.1} parent=1 // pred_check
      _
    $region7: #{tpu_custom_call.1} parent=1 // pred_check_branch
      %12 = sbr.rel (0) target = $region9
    $region8: #{tpu_custom_call.1} parent=1 // pred_region
      _
    $region9: #{tpu_custom_call.1} parent=1 // pred_fallthru
      _
    // Predicated region
    $region10: #{tpu_custom_call.1} parent=1 // pred_check
      _
    $region11: #{tpu_custom_call.1} parent=1 // pred_check_branch
      %14 = sbr.rel (0) target = $region13
    $region12: #{tpu_custom_call.1} parent=1 // pred_region
      _
    $region13: #{tpu_custom_call.1} parent=1 // pred_fallthru
      _
    %v15 = vld [vmem:[%s0] sm:$0xff]
    %v16 = vld [vmem:[%s0 + $0x8] sm:$0xff]
    %v17 = vld [vmem:[%s0 + $0x10] sm:$0xff]
    %v18 = vld [vmem:[%s0 + $0x18] sm:$0xff]
    %v19 = vld [vmem:[%s1] sm:$0xff]
    %v20 = vld [vmem:[%s1 + $0x8] sm:$0xff]
    %v21 = vld [vmem:[%s1 + $0x10] sm:$0xff]
    %v22 = vld [vmem:[%s1 + $0x18] sm:$0xff]
    %v23 = vld [vmem:[%s2] sm:$0xff]
    %v24 = vld [vmem:[%s2 + $0x8] sm:$0xff]
    %v25 = vld [vmem:[%s2 + $0x10] sm:$0xff]
    %v26 = vld [vmem:[%s2 + $0x18] sm:$0xff]
    %28 = vset.pattern.permute.xlu0 0
    %29 = vperm.xlu0 %28, %v23
    %v30 = vpop.permute.xlu0 %29
    %33 = vset.pattern.permute.xlu0 0
    %34 = vperm.xlu0 %33, %v24
    %v35 = vpop.permute.xlu0 %34
    %38 = vset.pattern.permute.xlu0 0
    %39 = vperm.xlu0 %38, %v25
    %v40 = vpop.permute.xlu0 %39
    %43 = vset.pattern.permute.xlu0 0
    %44 = vperm.xlu0 %43, %v26
    %v45 = vpop.permute.xlu0 %44
    %vm47 = vcmask 261120
    %v49 = vsel %vm47, %v19, 0
    %v52 = vsel %vm47, %v20, 0
    %v55 = vsel %vm47, %v21, 0
    %v58 = vsel %vm47, %v22, 0
    %60 = vmatpush.msra.mxu0 0.0
    %61 = vmatpush.msra.mxu0 0.0
    %62 = vmatpush.msra.mxu0 0.0
    %63 = vmatpush.msra.mxu0 0.0
    %64 = vmatpush.msra.mxu0 0.0
    %65 = vmatpush.msra.mxu0 0.0
    %66 = vmatpush.msra.mxu0 0.0
    %67 = vmatpush.msra.mxu0 0.0
    %68 = vmatpush.msra.mxu0 0.0
    %69 = vmatpush.msra.mxu0 0.0
    %70 = vmatpush.msra.mxu0 0.0
    %71 = vmatpush.msra.mxu0 0.0
    %72 = vmatpush.msra.mxu0 %v18
    %73 = vmatpush.msra.mxu0 %v17
    %74 = vmatpush.msra.mxu0 %v16
    %75 = vmatpush.msra.mxu0 %v15
    %76 = vmatmul.f32.gmra.mxu0 %v49
    %v77 = vpop.f32.mrf.mxu0
    %v78 = vadd.f32 %v30, %v77
    %79 = vmatmul.f32.gmra.mxu0 %v52
    %v80 = vpop.f32.mrf.mxu0
    %v81 = vadd.f32 %v35, %v80
    %82 = vmatmul.f32.gmra.mxu0 %v55
    %v83 = vpop.f32.mrf.mxu0
    %v84 = vadd.f32 %v40, %v83
    %85 = vmatmul.f32.gmra.mxu0 %v58
    %v86 = vpop.f32.mrf.mxu0
    %v87 = vadd.f32 %v45, %v86
    %88 = vdwg.mxu0
    %vm89 = vcmask 523264
    %v90 = vsel %vm89, %v78, 0.0
    %v91 = vsel %vm89, %v81, 0.0
    %v92 = vadd.f32 %v90, %v91
    %v93 = vsel %vm89, %v84, 0.0
    %v94 = vadd.f32 %v92, %v93
    %v95 = vsel %vm89, %v87, 0.0
    %v96 = vadd.f32 %v94, %v95
    %v97 = vrot.slane %v96, 4
    %v98 = vadd.f32 %v96, %v97
    %v99 = vrot.slane %v98, 2
    %v100 = vadd.f32 %v98, %v99
    %v101 = vrot.slane %v100, 1
    %v102 = vadd.f32 %v100, %v101
    %v103 = vrcp.pop 32.0
    %v104 = vmul.f32 32.0, %v103
    %v105 = vsub.f32 1.0, %v104
    %v106 = vmul.f32 %v103, %v105
    %v107 = vadd.f32 %v103, %v106
    %vm108 = vweird.f32 %v103
    %v109 = vsel %vm108, %v103, %v107
    %v110 = vmul.f32 %v102, %v109
    %v111 = vmul.f32 %v78, %v78
    %v112 = vmul.f32 %v81, %v81
    %v113 = vmul.f32 %v84, %v84
    %v114 = vmul.f32 %v87, %v87
    %v115 = vsel %vm89, %v111, 0.0
    %v116 = vsel %vm89, %v112, 0.0
    %v117 = vadd.f32 %v115, %v116
    %v118 = vsel %vm89, %v113, 0.0
    %v119 = vadd.f32 %v117, %v118
    %v120 = vsel %vm89, %v114, 0.0
    %v121 = vadd.f32 %v119, %v120
    %v122 = vrot.slane %v121, 4
    %v123 = vadd.f32 %v121, %v122
    %v124 = vrot.slane %v123, 2
    %v125 = vadd.f32 %v123, %v124
    %v126 = vrot.slane %v125, 1
    %v127 = vadd.f32 %v125, %v126
    %v128 = vmul.f32 %v127, %v109
    %v129 = vmul.f32 %v110, %v110
    %v130 = vsub.f32 %v128, %v129
    %v131 = vmax.f32 %v130, 0.0
    %v132 = vsub.f32 %v78, %v110
    %v133 = vsub.f32 %v81, %v110
    %v134 = vsub.f32 %v84, %v110
    %v135 = vsub.f32 %v87, %v110
    %v136 = vadd.f32 %v131, 1e-05
    %v137 = vrsqrt.pop %v136
    %v138 = vmul.f32 %v137, %v136
    %v139 = vmul.f32 %v138, %v137
    %v140 = vmul.f32 0.5, %v139
    %v141 = vsub.f32 1.5, %v140
    %v142 = vmul.f32 %v137, %v141
    %vm143 = vweird.f32 %v136
    %vm144 = vweird.f32 %v137
    %vm145 = vmor %vm143, %vm144
    %v146 = vsel %vm145, %v137, %v142
    %v147 = vmul.f32 %v132, %v146
    %v148 = vmul.f32 %v133, %v146
    %v149 = vmul.f32 %v134, %v146
    %v150 = vmul.f32 %v135, %v146
    %151 = vset.pattern.permute.xlu0 3
    %152 = vperm.xlu0 %151, %v23
    %v153 = vpop.permute.xlu0 %152
    %155 = vset.pattern.permute.xlu0 3
    %156 = vperm.xlu0 %155, %v24
    %v157 = vpop.permute.xlu0 %156
    %159 = vset.pattern.permute.xlu0 3
    %160 = vperm.xlu0 %159, %v25
    %v161 = vpop.permute.xlu0 %160
    %163 = vset.pattern.permute.xlu0 3
    %164 = vperm.xlu0 %163, %v26
    %v165 = vpop.permute.xlu0 %164
    %v167 = vmul.f32 %v147, %v153
    %v168 = vmul.f32 %v148, %v157
    %v169 = vmul.f32 %v149, %v161
    %v170 = vmul.f32 %v150, %v165
    %171 = vset.pattern.permute.xlu0 5
    %172 = vperm.xlu0 %171, %v23
    %v173 = vpop.permute.xlu0 %172
    %175 = vset.pattern.permute.xlu0 5
    %176 = vperm.xlu0 %175, %v24
    %v177 = vpop.permute.xlu0 %176
    %179 = vset.pattern.permute.xlu0 5
    %180 = vperm.xlu0 %179, %v25
    %v181 = vpop.permute.xlu0 %180
    %183 = vset.pattern.permute.xlu0 5
    %184 = vperm.xlu0 %183, %v26
    %v185 = vpop.permute.xlu0 %184
    %v187 = vadd.f32 %v167, %v173
    %v188 = vadd.f32 %v168, %v177
    %v189 = vadd.f32 %v169, %v181
    %v190 = vadd.f32 %v170, %v185
    %v191 = vmax.f32 %v187, 0.0
    %v192 = vmax.f32 %v188, 0.0
    %v193 = vmax.f32 %v189, 0.0
    %v194 = vmax.f32 %v190, 0.0
    %v195 = vld [vmem:[%s1 + $0x20] sm:$0xff]
    %v196 = vld [vmem:[%s1 + $0x28] sm:$0xff]
    %v197 = vld [vmem:[%s1 + $0x30] sm:$0xff]
    %v198 = vld [vmem:[%s1 + $0x38] sm:$0xff]
    %199 = vset.pattern.permute.xlu0 1
    %200 = vperm.xlu0 %199, %v23
    %v201 = vpop.permute.xlu0 %200
    %203 = vset.pattern.permute.xlu0 1
    %204 = vperm.xlu0 %203, %v24
    %v205 = vpop.permute.xlu0 %204
    %207 = vset.pattern.permute.xlu0 1
    %208 = vperm.xlu0 %207, %v25
    %v209 = vpop.permute.xlu0 %208
    %211 = vset.pattern.permute.xlu0 1
    %212 = vperm.xlu0 %211, %v26
    %v213 = vpop.permute.xlu0 %212
    %v216 = vsel %vm47, %v195, 0
    %v219 = vsel %vm47, %v196, 0
    %v222 = vsel %vm47, %v197, 0
    %v225 = vsel %vm47, %v198, 0
    %227 = vmatpush.msra.mxu0 0.0
    %228 = vmatpush.msra.mxu0 0.0
    %229 = vmatpush.msra.mxu0 0.0
    %230 = vmatpush.msra.mxu0 0.0
    %231 = vmatpush.msra.mxu0 0.0
    %232 = vmatpush.msra.mxu0 0.0
    %233 = vmatpush.msra.mxu0 0.0
    %234 = vmatpush.msra.mxu0 0.0
    %235 = vmatpush.msra.mxu0 0.0
    %236 = vmatpush.msra.mxu0 0.0
    %237 = vmatpush.msra.mxu0 0.0
    %238 = vmatpush.msra.mxu0 0.0
    %239 = vmatpush.msra.mxu0 %v194
    %240 = vmatpush.msra.mxu0 %v193
    %241 = vmatpush.msra.mxu0 %v192
    %242 = vmatpush.msra.mxu0 %v191
    %243 = vmatmul.f32.gmra.mxu0 %v216
    %v244 = vpop.f32.mrf.mxu0
    %v245 = vadd.f32 %v201, %v244
    %246 = vmatmul.f32.gmra.mxu0 %v219
    %v247 = vpop.f32.mrf.mxu0
    %v248 = vadd.f32 %v205, %v247
    %249 = vmatmul.f32.gmra.mxu0 %v222
    %v250 = vpop.f32.mrf.mxu0
    %v251 = vadd.f32 %v209, %v250
    %252 = vmatmul.f32.gmra.mxu0 %v225
    %v253 = vpop.f32.mrf.mxu0
    %v254 = vadd.f32 %v213, %v253
    %255 = vdwg.mxu0
    %v256 = vsel %vm89, %v245, 0.0
    %v257 = vsel %vm89, %v248, 0.0
    %v258 = vadd.f32 %v256, %v257
    %v259 = vsel %vm89, %v251, 0.0
    %v260 = vadd.f32 %v258, %v259
    %v261 = vsel %vm89, %v254, 0.0
    %v262 = vadd.f32 %v260, %v261
    %v263 = vrot.slane %v262, 4
    %v264 = vadd.f32 %v262, %v263
    %v265 = vrot.slane %v264, 2
    %v266 = vadd.f32 %v264, %v265
    %v267 = vrot.slane %v266, 1
    %v268 = vadd.f32 %v266, %v267
    %v269 = vmul.f32 %v268, %v109
    %v270 = vmul.f32 %v245, %v245
    %v271 = vmul.f32 %v248, %v248
    %v272 = vmul.f32 %v251, %v251
    %v273 = vmul.f32 %v254, %v254
    %v274 = vsel %vm89, %v270, 0.0
    %v275 = vsel %vm89, %v271, 0.0
    %v276 = vadd.f32 %v274, %v275
    %v277 = vsel %vm89, %v272, 0.0
    %v278 = vadd.f32 %v276, %v277
    %v279 = vsel %vm89, %v273, 0.0
    %v280 = vadd.f32 %v278, %v279
    %v281 = vrot.slane %v280, 4
    %v282 = vadd.f32 %v280, %v281
    %v283 = vrot.slane %v282, 2
    %v284 = vadd.f32 %v282, %v283
    %v285 = vrot.slane %v284, 1
    %v286 = vadd.f32 %v284, %v285
    %v287 = vmul.f32 %v286, %v109
    %v288 = vmul.f32 %v269, %v269
    %v289 = vsub.f32 %v287, %v288
    %v290 = vmax.f32 %v289, 0.0
    %v291 = vsub.f32 %v245, %v269
    %v292 = vsub.f32 %v248, %v269
    %v293 = vsub.f32 %v251, %v269
    %v294 = vsub.f32 %v254, %v269
    %v295 = vadd.f32 %v290, 1e-05
    %v296 = vrsqrt.pop %v295
    %v297 = vmul.f32 %v296, %v295
    %v298 = vmul.f32 %v297, %v296
    %v299 = vmul.f32 0.5, %v298
    %v300 = vsub.f32 1.5, %v299
    %v301 = vmul.f32 %v296, %v300
    %vm302 = vweird.f32 %v295
    %vm303 = vweird.f32 %v296
    %vm304 = vmor %vm302, %vm303
    %v305 = vsel %vm304, %v296, %v301
    %v306 = vmul.f32 %v291, %v305
    %v307 = vmul.f32 %v292, %v305
    %v308 = vmul.f32 %v293, %v305
    %v309 = vmul.f32 %v294, %v305
    %310 = vset.pattern.permute.xlu0 4
    %311 = vperm.xlu0 %310, %v23
    %v312 = vpop.permute.xlu0 %311
    %314 = vset.pattern.permute.xlu0 4
    %315 = vperm.xlu0 %314, %v24
    %v316 = vpop.permute.xlu0 %315
    %318 = vset.pattern.permute.xlu0 4
    %319 = vperm.xlu0 %318, %v25
    %v320 = vpop.permute.xlu0 %319
    %322 = vset.pattern.permute.xlu0 4
    %323 = vperm.xlu0 %322, %v26
    %v324 = vpop.permute.xlu0 %323
    %v326 = vmul.f32 %v306, %v312
    %v327 = vmul.f32 %v307, %v316
    %v328 = vmul.f32 %v308, %v320
    %v329 = vmul.f32 %v309, %v324
    %330 = vset.pattern.permute.xlu0 6
    %331 = vperm.xlu0 %330, %v23
    %v332 = vpop.permute.xlu0 %331
    %334 = vset.pattern.permute.xlu0 6
    %335 = vperm.xlu0 %334, %v24
    %v336 = vpop.permute.xlu0 %335
    %338 = vset.pattern.permute.xlu0 6
    %339 = vperm.xlu0 %338, %v25
    %v340 = vpop.permute.xlu0 %339
    %342 = vset.pattern.permute.xlu0 6
    %343 = vperm.xlu0 %342, %v26
    %v344 = vpop.permute.xlu0 %343
    %v346 = vadd.f32 %v326, %v332
    %v347 = vadd.f32 %v327, %v336
    %v348 = vadd.f32 %v328, %v340
    %v349 = vadd.f32 %v329, %v344
    %v350 = vmax.f32 %v346, 0.0
    %v351 = vmax.f32 %v347, 0.0
    %v352 = vmax.f32 %v348, 0.0
    %v353 = vmax.f32 %v349, 0.0
    %v354 = vld [vmem:[%s1 + $0x40] sm:$0xff]
    %v355 = vld [vmem:[%s1 + $0x48] sm:$0xff]
    %v356 = vld [vmem:[%s2] sm:$0xff]
    %v357 = vld [vmem:[%s2 + $0x8] sm:$0xff]
    %359 = vset.pattern.permute.xlu0 2
    %360 = vperm.xlu0 %359, %v356
    %v361 = vpop.permute.xlu0 %360
    %364 = vset.pattern.permute.xlu0 2
    %365 = vperm.xlu0 %364, %v357
    %v366 = vpop.permute.xlu0 %365
    %v369 = vsel %vm47, %v354, 0
    %v372 = vsel %vm47, %v355, 0
    %374 = vmatpush.msra.mxu0 0.0
    %375 = vmatpush.msra.mxu0 0.0
    %376 = vmatpush.msra.mxu0 0.0
    %377 = vmatpush.msra.mxu0 0.0
    %378 = vmatpush.msra.mxu0 0.0
    %379 = vmatpush.msra.mxu0 0.0
    %380 = vmatpush.msra.mxu0 0.0
    %381 = vmatpush.msra.mxu0 0.0
    %382 = vmatpush.msra.mxu0 0.0
    %383 = vmatpush.msra.mxu0 0.0
    %384 = vmatpush.msra.mxu0 0.0
    %385 = vmatpush.msra.mxu0 0.0
    %386 = vmatpush.msra.mxu0 %v353
    %387 = vmatpush.msra.mxu0 %v352
    %388 = vmatpush.msra.mxu0 %v351
    %389 = vmatpush.msra.mxu0 %v350
    %390 = vmatmul.f32.gmra.mxu0 %v369
    %v391 = vpop.f32.mrf.mxu0
    %v392 = vadd.f32 %v361, %v391
    %393 = vmatmul.f32.gmra.mxu0 %v372
    %v394 = vpop.f32.mrf.mxu0
    %v395 = vadd.f32 %v366, %v394
    %396 = vdwg.mxu0
    %397 = vst.msk [vmem:[#allocation2] sm:$0xff] %vm89, %v392
    %398 = vst.msk [vmem:[#allocation2 + $0x8] sm:$0xff] %vm89, %v395
    // Predicated region
    $region14: #{tpu_custom_call.1} parent=1 // pred_check
      _
    $region15: #{tpu_custom_call.1} parent=1 // pred_check_branch
      %400 = sbr.rel (0) target = $region17
    $region16: #{tpu_custom_call.1} parent=1 // pred_region
      %402 = vsyncadd [#allocation3], 0
      %s403 = sshll.u32 [#allocation2], 4
      %s404 = int_to_ptr.vmem [resolvable:$true] %s403
      %s405 = sshll.u32 %s3, 4
      %s406 = int_to_ptr.hbm [resolvable:$true] %s405
      %411 = dma.vmem_to_hbm [thread:$0]  %s404, 256, %s406, [#allocation3], 128, 128, 8
    $region17: #{tpu_custom_call.1} parent=1 // pred_fallthru
      _
    // Predicated region
    $region18: #{tpu_custom_call.1} parent=1 // pred_check
      _
    $region19: #{tpu_custom_call.1} parent=1 // pred_check_branch
      %413 = sbr.rel (0) target = $region21
    $region20: #{tpu_custom_call.1} parent=1 // pred_region
      %415 = dma.done [#allocation3], 256
    $region21: #{tpu_custom_call.1} parent=1 // pred_fallthru
      _
    %416 = vsyncpa [#allocation3], 1

</llo_original>
